<compile_context>
chip_gen: v5e
topology: v5e:2x2
jax: 0.10.0
libtpu: 0.0.40
codegen_flags: <defaults>
</compile_context>

<pallas_src>
import functools

import jax
import jax.numpy as jnp
from jax.experimental import pallas as pl
from jax.experimental.pallas import tpu as pltpu

LANE = 128
SUBLANE = 8
TB_MAX = 512  # large-batch tile: amortizes per-grid-step overhead


def _round_up(n, m):
    return ((n + m - 1) // m) * m


def _tpu_kind():
    try:
        return jax.devices()[0].device_kind.lower()
    except Exception:
        return ""


_TPU_KIND = _tpu_kind()
_IS_V5 = "v5" in _TPU_KIND          # no bf16 VPU/EUP on v5e -> keep tanh in f32
_HAS_TWO_CORES = "v7" in _TPU_KIND  # v7x: 2 TensorCores/chip -> want grid >= 2


def net_forward_kernel(x_ref, w1_ref, b1_ref, w2p_ref, b2p_ref,
                       wv3_ref, bv3_ref, logits_ref, values_ref,
                       *, hdim, bf16_tanh):
    """One batch tile of the fused A3C forward pass."""
    x = x_ref[...].astype(jnp.bfloat16)

    # Fused first layer of both heads: [TB, s_dim] @ [s_dim, 2*896] on the MXU.
    pre = jnp.dot(x, w1_ref[...], preferred_element_type=jnp.float32) + b1_ref[...]

    # Double tanh reproduces the PyTorch forward (pi2/v2 Linear layers unused).
    if bf16_tanh:
        # v6e/v7x: EUP handles bf16 ~2x faster; result is cast to bf16 anyway.
        h = jnp.tanh(jnp.tanh(pre.astype(jnp.bfloat16)))
    else:
        # v5e: no bf16 EUP — keep the transcendentals in f32, cast after.
        h = jnp.tanh(jnp.tanh(pre)).astype(jnp.bfloat16)

    pi2 = h[:, :hdim]   # 896 = 7*128 -> lane-aligned, free slice
    v2 = h[:, hdim:]

    # Policy head with action_mappings pre-folded into the weights (MXU).
    # Single full-width lane-dense f32 store.
    logits_ref[...] = (
        jnp.dot(pi2, w2p_ref[...], preferred_element_type=jnp.float32)
        + b2p_ref[...]
    )

    # Value head on the VPU + XLU: broadcast row-vector weight, lane reduce.
    # Avoids a zero-padded [896, 128] MXU matmul and 128 lanes of f32 writeback.
    values_ref[...] = (
        jnp.sum(v2.astype(jnp.float32) * wv3_ref[...], axis=-1, keepdims=True)
        + bv3_ref[...]
    )


def prepare_params(params, action_mappings, weight_dtype=jnp.bfloat16):
    """One-time weight prep: fold action_mappings, fuse heads, cast to bf16.

    Must be re-run if action_mappings or the raw params change.
    """
    m = action_mappings.shape[1]
    m_pad = _round_up(m, LANE)

    w1 = jnp.concatenate([params["w_pi1"], params["w_v1"]], axis=1)   # [S, 1792]
    b1 = jnp.concatenate([params["b_pi1"], params["b_v1"]], axis=1)   # [1, 1792]

    # Fold the action-mapping matmul into the pi3 layer (f32 fold, then cast).
    w2p = params["w_pi3"] @ action_mappings                           # [896, M]
    b2p = params["b_pi3"] @ action_mappings                           # [1, M]
    w2p = jnp.pad(w2p, ((0, 0), (0, m_pad - m)))
    b2p = jnp.pad(b2p, ((0, 0), (0, m_pad - m)))

    return {
        "w1": w1.astype(weight_dtype),
        "b1": b1.astype(jnp.float32),
        "w2p": w2p.astype(weight_dtype),
        "b2p": b2p.astype(jnp.float32),
        # Value weight kept as an f32 row vector for the VPU/XLU path.
        "wv3": params["w_v3"].T.astype(jnp.float32),                  # [1, 896]
        "bv3": params["b_v3"].astype(jnp.float32),                    # [1, 1]
    }


def _choose_batch_tiling(b):
    """Pick (batch_tile, padded_batch)."""
    b8 = max(SUBLANE, _round_up(b, SUBLANE))
    if _HAS_TWO_CORES and b > 2 * SUBLANE:
        # v7x: make sure the "parallel" grid has >= 2 steps so both TCs work.
        tb = min(TB_MAX, _round_up((b8 + 1) // 2, SUBLANE))
    else:
        tb = min(TB_MAX, b8)
    b_pad = _round_up(b8, tb)
    return tb, b_pad


@functools.partial(jax.jit, static_argnames=("n_logits",))
def net_forward(x, prep, *, n_logits):
    b, s_dim = x.shape
    hdim = prep["w2p"].shape[0]      # 896
    m_pad = prep["w2p"].shape[1]     # padded logits width (multiple of 128)
    assert n_logits <= m_pad, "n_logits exceeds prepared logits width"

    tb, b_pad = _choose_batch_tiling(b)
    if b_pad != b:
        x = jnp.pad(x, ((0, b_pad - b), (0, 0)))
    grid = (b_pad // tb,)

    kernel = functools.partial(net_forward_kernel, hdim=hdim,
                               bf16_tanh=not _IS_V5)

    flops = 2 * b_pad * (s_dim * 2 * hdim + hdim * m_pad + hdim)
    transcendentals = 2 * b_pad * 2 * hdim
    bytes_accessed = int(
        x.size * x.dtype.itemsize
        + sum(v.size * v.dtype.itemsize for v in prep.values())
        + b_pad * (m_pad + 1) * 4
    )

    # Weights: single block, constant index_map -> VMEM-resident across tiles.
    # NOTE: these could also be marked pipeline_mode=pl.Buffered(1) to skip the
    # default double-buffer allocation; left at default — VMEM is far from full.
    const = lambda i: (0, 0)
    logits, values = pl.pallas_call(
        kernel,
        out_shape=(
            jax.ShapeDtypeStruct((b_pad, m_pad), jnp.float32),
            jax.ShapeDtypeStruct((b_pad, 1), jnp.float32),
        ),
        grid=grid,
        in_specs=[
            pl.BlockSpec((tb, s_dim), lambda i: (i, 0)),   # x streams per tile
            pl.BlockSpec(prep["w1"].shape, const),
            pl.BlockSpec(prep["b1"].shape, const),
            pl.BlockSpec(prep["w2p"].shape, const),
            pl.BlockSpec(prep["b2p"].shape, const),
            pl.BlockSpec(prep["wv3"].shape, const),
            pl.BlockSpec(prep["bv3"].shape, const),
        ],
        out_specs=(
            pl.BlockSpec((tb, m_pad), lambda i: (i, 0)),
            pl.BlockSpec((tb, 1), lambda i: (i, 0)),
        ),
        compiler_params=pltpu.CompilerParams(
            dimension_semantics=("parallel",)),
        cost_estimate=pl.CostEstimate(
            flops=flops, transcendentals=transcendentals,
            bytes_accessed=bytes_accessed),
    )(x, prep["w1"], prep["b1"], prep["w2p"], prep["b2p"],
      prep["wv3"], prep["bv3"])

    return logits[:b, :n_logits], values[:b]


def init_params(key, s_dim, n_actions, hidden=896):
    """Deterministic synthetic init (stands in for set_init)."""
    ks = jax.random.split(key, 8)
    scale = 0.1
    return {
        "w_pi1": scale * jax.random.normal(ks[0], (s_dim, hidden), jnp.float32),
        "b_pi1": scale * jax.random.normal(ks[1], (1, hidden), jnp.float32),
        "w_pi3": scale * jax.random.normal(ks[2], (hidden, n_actions), jnp.float32),
        "b_pi3": scale * jax.random.normal(ks[3], (1, n_actions), jnp.float32),
        "w_v1": scale * jax.random.normal(ks[4], (s_dim, hidden), jnp.float32),
        "b_v1": scale * jax.random.normal(ks[5], (1, hidden), jnp.float32),
        "w_v3": scale * jax.random.normal(ks[6], (hidden, 1), jnp.float32),
        "b_v3": scale * jax.random.normal(ks[7], (1, 1), jnp.float32),
    }


def net_forward_ref(x, params, action_mappings):
    """Pure-JAX f32 reference mirroring the PyTorch forward exactly."""
    pi1 = jnp.tanh(x @ params["w_pi1"] + params["b_pi1"])
    pi2 = jnp.tanh(pi1)
    pi3 = pi2 @ params["w_pi3"] + params["b_pi3"]
    logits = pi3 @ action_mappings
    v1 = jnp.tanh(x @ params["w_v1"] + params["b_v1"])
    v2 = jnp.tanh(v1)
    values = v2 @ params["w_v3"] + params["b_v3"]
    return logits, values


def net_forward_ref_prepared(x, prep, n_logits):
    """Pure-JAX reference using the same prepared (bf16-weight) math as the kernel."""
    hdim = prep["w2p"].shape[0]
    xb = x.astype(jnp.bfloat16)
    pre = jnp.dot(xb, prep["w1"], preferred_element_type=jnp.float32) + prep["b1"]
    if not _IS_V5:
        h = jnp.tanh(jnp.tanh(pre.astype(jnp.bfloat16)))
    else:
        h = jnp.tanh(jnp.tanh(pre)).astype(jnp.bfloat16)
    logits = jnp.dot(h[:, :hdim], prep["w2p"],
                     preferred_element_type=jnp.float32) + prep["b2p"]
    values = jnp.sum(h[:, hdim:].astype(jnp.float32) * prep["wv3"],
                     axis=-1, keepdims=True) + prep["bv3"]
    return logits[:, :n_logits], values


if __name__ == "__main__":
    B, S_DIM, N_ACTIONS, M = 8, 32, 128, 256

    key = jax.random.PRNGKey(0)
    k_x, k_am, k_p = jax.random.split(key, 3)

    x = jax.random.normal(k_x, (B, S_DIM), jnp.float32)
    action_mappings = jax.random.normal(k_am, (N_ACTIONS, M), jnp.float32)
    params = init_params(k_p, S_DIM, N_ACTIONS)

    prep = prepare_params(params, action_mappings)   # one-time fold / fuse / cast

    logits, values = net_forward(x, prep, n_logits=M)
    jax.block_until_ready((logits, values))
    assert logits.shape == (B, M) and values.shape == (B, 1)

    def nerr(a, b):
        return float(jnp.max(jnp.abs(a - b)) / (jnp.max(jnp.abs(b)) + 1e-6))

    # 1) Kernel matches a pure-JAX model of the same (bf16-weight) math.
    logits_p, values_p = net_forward_ref_prepared(x, prep, M)
    assert nerr(logits, logits_p) < 2e-2, nerr(logits, logits_p)
    assert nerr(values, values_p) < 2e-2, nerr(values, values_p)

    # 2) Fidelity vs the original full-f32 PyTorch-style forward.
    logits_f, values_f = net_forward_ref(x, params, action_mappings)
    assert nerr(logits, logits_f) < 3e-2, nerr(logits, logits_f)
    assert nerr(values, values_f) < 3e-2, nerr(values, values_f)

    print("KERNEL_OK")
</pallas_src>

<mosaic_0001>
module attributes {stable_mosaic.version = 11 : i64} {
  func.func @net_forward_kernel(%arg0: i32, %arg1: memref<8x32xf32, #tpu.memory_space<vmem>>, %arg2: memref<32x1792xbf16, #tpu.memory_space<vmem>>, %arg3: memref<1x1792xf32, #tpu.memory_space<vmem>>, %arg4: memref<896x256xbf16, #tpu.memory_space<vmem>>, %arg5: memref<1x256xf32, #tpu.memory_space<vmem>>, %arg6: memref<1x896xf32, #tpu.memory_space<vmem>>, %arg7: memref<1x1xf32, #tpu.memory_space<vmem>>, %arg8: memref<8x256xf32, #tpu.memory_space<vmem>>, %arg9: memref<8x1xf32, #tpu.memory_space<vmem>>) attributes {dimension_semantics = [#tpu.dimension_semantics<parallel>], iteration_bounds = array<i64: 1>, scalar_prefetch = 0 : i64, scratch_operands = 0 : i64, tpu.core_type = #tpu.core_type<tc>, window_params = [{transform_indices = @transform_0, window_bounds = array<i64: 8, 32>}, {pipeline_mode = #tpu.pipeline_mode<synchronous>, transform_indices = @transform_1, window_bounds = array<i64: 32, 1792>}, {pipeline_mode = #tpu.pipeline_mode<synchronous>, transform_indices = @transform_2, window_bounds = array<i64: 1, 1792>}, {pipeline_mode = #tpu.pipeline_mode<synchronous>, transform_indices = @transform_3, window_bounds = array<i64: 896, 256>}, {pipeline_mode = #tpu.pipeline_mode<synchronous>, transform_indices = @transform_4, window_bounds = array<i64: 1, 256>}, {pipeline_mode = #tpu.pipeline_mode<synchronous>, transform_indices = @transform_5, window_bounds = array<i64: 1, 896>}, {pipeline_mode = #tpu.pipeline_mode<synchronous>, transform_indices = @transform_6, window_bounds = array<i64: 1, 1>}, {transform_indices = @transform_7, window_bounds = array<i64: 8, 256>}, {transform_indices = @transform_8, window_bounds = array<i64: 8, 1>}]} {
    %c0 = arith.constant 0 : index
    %c0_0 = arith.constant 0 : index
    %0 = vector.load %arg1[%c0, %c0_0] : memref<8x32xf32, #tpu.memory_space<vmem>>, vector<8x32xf32>
    %1 = arith.truncf %0 : vector<8x32xf32> to vector<8x32xbf16>
    %c0_1 = arith.constant 0 : index
    %c0_2 = arith.constant 0 : index
    %2 = vector.load %arg2[%c0_1, %c0_2] : memref<32x1792xbf16, #tpu.memory_space<vmem>>, vector<32x1792xbf16>
    %cst = arith.constant dense<0.000000e+00> : vector<8x1792xf32>
    %3 = tpu.matmul %1, %2, %cst {dimension_numbers = #tpu.dot_dimension_numbers<[1], [0], [0], [1], [0, 0, 1, 1], [], []>} : vector<8x32xbf16>, vector<32x1792xbf16>, vector<8x1792xf32> -> vector<8x1792xf32>
    %c0_3 = arith.constant 0 : index
    %c0_4 = arith.constant 0 : index
    %4 = vector.load %arg3[%c0_3, %c0_4] : memref<1x1792xf32, #tpu.memory_space<vmem>>, vector<1x1792xf32>
    %5 = vector.broadcast %4 : vector<1x1792xf32> to vector<8x1792xf32>
    %6 = arith.addf %3, %5 : vector<8x1792xf32>
    %7 = arith.truncf %6 : vector<8x1792xf32> to vector<8x1792xbf16>
    %8 = math.tanh %7 : vector<8x1792xbf16>
    %9 = math.tanh %8 : vector<8x1792xbf16>
    %10 = vector.extract_strided_slice %9 {offsets = [0, 0], sizes = [8, 896], strides = [1, 1]} : vector<8x1792xbf16> to vector<8x896xbf16>
    %11 = vector.extract_strided_slice %9 {offsets = [0, 896], sizes = [8, 896], strides = [1, 1]} : vector<8x1792xbf16> to vector<8x896xbf16>
    %c0_5 = arith.constant 0 : index
    %c0_6 = arith.constant 0 : index
    %12 = vector.load %arg4[%c0_5, %c0_6] : memref<896x256xbf16, #tpu.memory_space<vmem>>, vector<896x256xbf16>
    %cst_7 = arith.constant dense<0.000000e+00> : vector<8x256xf32>
    %13 = tpu.matmul %10, %12, %cst_7 {dimension_numbers = #tpu.dot_dimension_numbers<[1], [0], [0], [1], [0, 0, 1, 1], [], []>} : vector<8x896xbf16>, vector<896x256xbf16>, vector<8x256xf32> -> vector<8x256xf32>
    %c0_8 = arith.constant 0 : index
    %c0_9 = arith.constant 0 : index
    %14 = vector.load %arg5[%c0_8, %c0_9] : memref<1x256xf32, #tpu.memory_space<vmem>>, vector<1x256xf32>
    %15 = vector.broadcast %14 : vector<1x256xf32> to vector<8x256xf32>
    %16 = arith.addf %13, %15 : vector<8x256xf32>
    %c0_10 = arith.constant 0 : index
    %c0_11 = arith.constant 0 : index
    %17 = vector.load %arg8[%c0_10, %c0_11] : memref<8x256xf32, #tpu.memory_space<vmem>>, vector<8x256xf32>
    tpu.vector_store %arg8[%c0_10, %c0_11], %16 {strides = array<i32>} : memref<8x256xf32, #tpu.memory_space<vmem>>, vector<8x256xf32>,
    %18 = arith.extf %11 : vector<8x896xbf16> to vector<8x896xf32>
    %c0_12 = arith.constant 0 : index
    %c0_13 = arith.constant 0 : index
    %19 = vector.load %arg6[%c0_12, %c0_13] : memref<1x896xf32, #tpu.memory_space<vmem>>, vector<1x896xf32>
    %20 = vector.broadcast %19 : vector<1x896xf32> to vector<8x896xf32>
    %21 = arith.mulf %18, %20 : vector<8x896xf32>
    %cst_14 = arith.constant dense<0.000000e+00> : vector<8xf32>
    %22 = vector.multi_reduction <add>, %21, %cst_14 [1] : vector<8x896xf32> to vector<8xf32>
    %23 = vector.shape_cast %22 : vector<8xf32> to vector<8x1xf32>
    %c0_15 = arith.constant 0 : index
    %c0_16 = arith.constant 0 : index
    %24 = vector.load %arg7[%c0_15, %c0_16] : memref<1x1xf32, #tpu.memory_space<vmem>>, vector<1x1xf32>
    %25 = vector.broadcast %24 : vector<1x1xf32> to vector<8x1xf32>
    %26 = arith.addf %23, %25 : vector<8x1xf32>
    %c0_17 = arith.constant 0 : index
    %c0_18 = arith.constant 0 : index
    %27 = vector.load %arg9[%c0_17, %c0_18] : memref<8x1xf32, #tpu.memory_space<vmem>>, vector<8x1xf32>
    tpu.vector_store %arg9[%c0_17, %c0_18], %26 {strides = array<i32>} : memref<8x1xf32, #tpu.memory_space<vmem>>, vector<8x1xf32>,
    return
  }
  func.func @transform_0(%arg0: i32) -> (i32, i32) {
    %c0_i32 = arith.constant 0 : i32
    %c0_i32_0 = arith.constant 0 : i32
    return %arg0, %c0_i32 : i32, i32
  }
  func.func @transform_1(%arg0: i32) -> (i32, i32) {
    %c0_i32 = arith.constant 0 : i32
    %c0_i32_0 = arith.constant 0 : i32
    %c0_i32_1 = arith.constant 0 : i32
    return %c0_i32, %c0_i32_0 : i32, i32
  }
  func.func @transform_2(%arg0: i32) -> (i32, i32) {
    %c0_i32 = arith.constant 0 : i32
    %c0_i32_0 = arith.constant 0 : i32
    %c0_i32_1 = arith.constant 0 : i32
    return %c0_i32, %c0_i32_0 : i32, i32
  }
  func.func @transform_3(%arg0: i32) -> (i32, i32) {
    %c0_i32 = arith.constant 0 : i32
    %c0_i32_0 = arith.constant 0 : i32
    %c0_i32_1 = arith.constant 0 : i32
    return %c0_i32, %c0_i32_0 : i32, i32
  }
  func.func @transform_4(%arg0: i32) -> (i32, i32) {
    %c0_i32 = arith.constant 0 : i32
    %c0_i32_0 = arith.constant 0 : i32
    %c0_i32_1 = arith.constant 0 : i32
    return %c0_i32, %c0_i32_0 : i32, i32
  }
  func.func @transform_5(%arg0: i32) -> (i32, i32) {
    %c0_i32 = arith.constant 0 : i32
    %c0_i32_0 = arith.constant 0 : i32
    %c0_i32_1 = arith.constant 0 : i32
    return %c0_i32, %c0_i32_0 : i32, i32
  }
  func.func @transform_6(%arg0: i32) -> (i32, i32) {
    %c0_i32 = arith.constant 0 : i32
    %c0_i32_0 = arith.constant 0 : i32
    %c0_i32_1 = arith.constant 0 : i32
    return %c0_i32, %c0_i32_0 : i32, i32
  }
  func.func @transform_7(%arg0: i32) -> (i32, i32) {
    %c0_i32 = arith.constant 0 : i32
    %c0_i32_0 = arith.constant 0 : i32
    return %arg0, %c0_i32 : i32, i32
  }
  func.func @transform_8(%arg0: i32) -> (i32, i32) {
    %c0_i32 = arith.constant 0 : i32
    %c0_i32_0 = arith.constant 0 : i32
    return %arg0, %c0_i32 : i32, i32
  }
}

</mosaic_0001>

<llo_original>
// kernel: net_forward.1
$region0: #{net_forward.1}
  #allocation0 [shape = 'u32[]', space=smem, size = 0x4, offset = 0x4, fixed_abs, tag = 'smem constant byte address 0x4 - core index']
  #allocation1 [shape = 'u32[72,128]{1,0:T(1,128)}', space=vmem, size = 0x9000, scoped, tag = 'internal scratch']
  #allocation2 [shape = 'f32[1,1]{1,0:T(1,128)S(1)}', space=vmem, size = 0x200, scoped, tag = 'scoped memory for net_forward.1']
  %s0 = inlined_call_operand.hbm [shape: f32[8,32], index: 0, kind: input, shape index: {}]
  %s1 = inlined_call_operand.hbm [shape: bf16[32,1792], index: 1, kind: input, shape index: {}]
  %s2 = inlined_call_operand.hbm [shape: f32[1,1792], index: 2, kind: input, shape index: {}]
  %s3 = inlined_call_operand.hbm [shape: bf16[896,256], index: 3, kind: input, shape index: {}]
  %s4 = inlined_call_operand.vmem [shape: f32[1,256], index: 4, kind: input, shape index: {}]
  %s5 = inlined_call_operand.hbm [shape: f32[1,896], index: 5, kind: input, shape index: {}]
  %s6 = inlined_call_operand.<no memory space> [shape: f32[1,1], index: 6, kind: input, shape index: {}]
  %s7 = inlined_call_operand.hbm [shape: f32[8,256], index: 7, kind: output, shape index: {0}]
  %s8 = inlined_call_operand.vmem [shape: f32[8,1], index: 8, kind: output, shape index: {1}]
  %9 = xla_tuple %s7, %s8
  %s10 = sld [smem:[#allocation0]]
  $region66: #{net_forward.1} parent=0
    _
  %s12 = ssub.s32 1, %s10
  %s13 = scalar_select 0, %s12, %s10
  %v14 = vstv %s6
  %15 = vst [vmem:[#allocation2] sm:$0x1] %v14
  $region1: #{net_forward.1} parent=0
    #allocation3 [shape = 'u8[4096]{0}', space=vmem, size = 0x1000, scoped, tag = 'input window, operand 0, single buffered']
    #allocation4 [shape = 's32[1]{0}', space=sflag, size = 0x4, scoped, tag = 'scoped memory for net_forward.1']
    #allocation5 [shape = 's32[1]{0}', space=sflag, size = 0x4, scoped, tag = 'scoped memory for net_forward.1']
    #allocation6 [shape = 'u8[114688]{0}', space=vmem, size = 0x1c000, scoped, tag = 'input window, operand 1, single buffered']
    #allocation7 [shape = 's32[1]{0}', space=sflag, size = 0x4, scoped, tag = 'scoped memory for net_forward.1']
    #allocation8 [shape = 'u8[7168]{0}', space=vmem, size = 0x1c00, scoped, tag = 'input window, operand 2, single buffered']
    #allocation9 [shape = 'u8[458752]{0}', space=vmem, size = 0x70000, scoped, tag = 'input window, operand 3, single buffered']
    #allocation10 [shape = 's32[1]{0}', space=sflag, size = 0x4, scoped, tag = 'scoped memory for net_forward.1']
    #allocation11 [shape = 'u8[3584]{0}', space=vmem, size = 0x1000, scoped, tag = 'input window, operand 5, single buffered']
    #allocation12 [shape = 'u8[8192]{0}', space=vmem, size = 0x2000, scoped, tag = 'output window, operand 0, single buffered']
    %16 = vsyncpa [#allocation4], 0
    %17 = vsyncpa [#allocation7], 0
    %18 = vsyncpa [#allocation10], 0
    %19 = vsyncpa [#allocation5], 0
    // Predicated region
    $region2: #{net_forward.1} parent=1 // pred_check
      _
    $region3: #{net_forward.1} parent=1 // pred_check_branch
      %21 = sbr.rel (0) target = $region5
    $region4: #{net_forward.1} parent=1 // pred_region
      %23 = vsyncadd [#allocation4], 0
      %s25 = sshll.u32 %s0, 4
      %s26 = int_to_ptr.hbm [resolvable:$true] %s25
      %s27 = sshll.u32 [#allocation3], 4
      %s28 = int_to_ptr.vmem [resolvable:$true] %s27
      %30 = dma.hbm_to_vmem [thread:$0]  %s26, 128, %s28, [#allocation4]
    $region5: #{net_forward.1} parent=1 // pred_fallthru
      _
    // Predicated region
    $region6: #{net_forward.1} parent=1 // pred_check
      _
    $region7: #{net_forward.1} parent=1 // pred_check_branch
      %32 = sbr.rel (0) target = $region9
    $region8: #{net_forward.1} parent=1 // pred_region
      %34 = vsyncadd [#allocation7], 0
      %s35 = sshll.u32 %s1, 4
      %s36 = int_to_ptr.hbm [resolvable:$true] %s35
      %s37 = sshll.u32 [#allocation6], 4
      %s38 = int_to_ptr.vmem [resolvable:$true] %s37
      %43 = dma.hbm_to_vmem [thread:$0]  %s36, 3584, %s38, [#allocation7], 896, 896, 56
    $region9: #{net_forward.1} parent=1 // pred_fallthru
      _
    // Predicated region
    $region10: #{net_forward.1} parent=1 // pred_check
      _
    $region11: #{net_forward.1} parent=1 // pred_check_branch
      %45 = sbr.rel (0) target = $region13
    $region12: #{net_forward.1} parent=1 // pred_region
      %47 = vsyncadd [#allocation7], 0
      %s49 = sshll.u32 %s2, 4
      %s50 = int_to_ptr.hbm [resolvable:$true] %s49
      %s51 = sshll.u32 [#allocation8], 4
      %s52 = int_to_ptr.vmem [resolvable:$true] %s51
      %54 = dma.hbm_to_vmem [thread:$0]  %s50, 224, %s52, [#allocation7]
    $region13: #{net_forward.1} parent=1 // pred_fallthru
      _
    // Predicated region
    $region14: #{net_forward.1} parent=1 // pred_check
      _
    $region15: #{net_forward.1} parent=1 // pred_check_branch
      %56 = sbr.rel (0) target = $region17
    $region16: #{net_forward.1} parent=1 // pred_region
      %58 = vsyncadd [#allocation10], 0
      %s59 = sshll.u32 %s3, 4
      %s60 = int_to_ptr.hbm [resolvable:$true] %s59
      %s61 = sshll.u32 [#allocation9], 4
      %s62 = int_to_ptr.vmem [resolvable:$true] %s61
      %67 = dma.hbm_to_vmem [thread:$0]  %s60, 14336, %s62, [#allocation10], 128, 128, 8
    $region17: #{net_forward.1} parent=1 // pred_fallthru
      _
    // Predicated region
    $region18: #{net_forward.1} parent=1 // pred_check
      _
    $region19: #{net_forward.1} parent=1 // pred_check_branch
      %69 = sbr.rel (0) target = $region21
    $region20: #{net_forward.1} parent=1 // pred_region
      _
    $region21: #{net_forward.1} parent=1 // pred_fallthru
      _
    // Predicated region
    $region22: #{net_forward.1} parent=1 // pred_check
      _
    $region23: #{net_forward.1} parent=1 // pred_check_branch
      %71 = sbr.rel (0) target = $region25
    $region24: #{net_forward.1} parent=1 // pred_region
      %73 = vsyncadd [#allocation10], 0
      %s75 = sshll.u32 %s5, 4
      %s76 = int_to_ptr.hbm [resolvable:$true] %s75
      %s77 = sshll.u32 [#allocation11], 4
      %s78 = int_to_ptr.vmem [resolvable:$true] %s77
      %80 = dma.hbm_to_vmem [thread:$0]  %s76, 112, %s78, [#allocation10]
    $region25: #{net_forward.1} parent=1 // pred_fallthru
      _
    // Predicated region
    $region26: #{net_forward.1} parent=1 // pred_check
      _
    $region27: #{net_forward.1} parent=1 // pred_check_branch
      %82 = sbr.rel (0) target = $region29
    $region28: #{net_forward.1} parent=1 // pred_region
      _
    $region29: #{net_forward.1} parent=1 // pred_fallthru
      _
    // Predicated region
    $region30: #{net_forward.1} parent=1 // pred_check
      _
    $region31: #{net_forward.1} parent=1 // pred_check_branch
      %84 = sbr.rel (0) target = $region33
    $region32: #{net_forward.1} parent=1 // pred_region
      %86 = dma.done [#allocation4], 128
    $region33: #{net_forward.1} parent=1 // pred_fallthru
      _
    // Predicated region
    $region34: #{net_forward.1} parent=1 // pred_check
      _
    $region35: #{net_forward.1} parent=1 // pred_check_branch
      %88 = sbr.rel (0) target = $region37
    $region36: #{net_forward.1} parent=1 // pred_region
      %90 = dma.done [#allocation7], 3584
    $region37: #{net_forward.1} parent=1 // pred_fallthru
      _
    // Predicated region
    $region38: #{net_forward.1} parent=1 // pred_check
      _
    $region39: #{net_forward.1} parent=1 // pred_check_branch
      %92 = sbr.rel (0) target = $region41
    $region40: #{net_forward.1} parent=1 // pred_region
      %94 = dma.done [#allocation7], 224
    $region41: #{net_forward.1} parent=1 // pred_fallthru
      _
    // Predicated region
    $region42: #{net_forward.1} parent=1 // pred_check
      _
    $region43: #{net_forward.1} parent=1 // pred_check_branch
      %96 = sbr.rel (0) target = $region45
    $region44: #{net_forward.1} parent=1 // pred_region
      %98 = dma.done [#allocation10], 14336
    $region45: #{net_forward.1} parent=1 // pred_fallthru
      _
    // Predicated region
    $region46: #{net_forward.1} parent=1 // pred_check
      _
    $region47: #{net_forward.1} parent=1 // pred_check_branch
      %100 = sbr.rel (0) target = $region49
    $region48: #{net_forward.1} parent=1 // pred_region
      %102 = dma.done [#allocation10], 112
    $region49: #{net_forward.1} parent=1 // pred_fallthru
      _
    %v104 = vld [vmem:[#allocation3] sm:$0xff]
    %v105 = vpack.c.bf16 %v104, %v104
    %v106 = vld [vmem:[#allocation6] sm:$0xff]
    %v107 = vld [vmem:[#allocation6 + $0x8] sm:$0xff]
    %v108 = vld [vmem:[#allocation6 + $0x10] sm:$0xff]
    %v109 = vld [vmem:[#allocation6 + $0x18] sm:$0xff]
    %v110 = vld [vmem:[#allocation6 + $0x20] sm:$0xff]
    %v111 = vld [vmem:[#allocation6 + $0x28] sm:$0xff]
    %v112 = vld [vmem:[#allocation6 + $0x30] sm:$0xff]
    %v113 = vld [vmem:[#allocation6 + $0x38] sm:$0xff]
    %v114 = vld [vmem:[#allocation6 + $0x40] sm:$0xff]
    %v115 = vld [vmem:[#allocation6 + $0x48] sm:$0xff]
    %v116 = vld [vmem:[#allocation6 + $0x50] sm:$0xff]
    %v117 = vld [vmem:[#allocation6 + $0x58] sm:$0xff]
    %v118 = vld [vmem:[#allocation6 + $0x60] sm:$0xff]
    %v119 = vld [vmem:[#allocation6 + $0x68] sm:$0xff]
    %v120 = vld [vmem:[#allocation6 + $0x70] sm:$0xff]
    %v121 = vld [vmem:[#allocation6 + $0x78] sm:$0xff]
    %v122 = vld [vmem:[#allocation6 + $0x80] sm:$0xff]
    %v123 = vld [vmem:[#allocation6 + $0x88] sm:$0xff]
    %v124 = vld [vmem:[#allocation6 + $0x90] sm:$0xff]
    %v125 = vld [vmem:[#allocation6 + $0x98] sm:$0xff]
    %v126 = vld [vmem:[#allocation6 + $0xa0] sm:$0xff]
    %v127 = vld [vmem:[#allocation6 + $0xa8] sm:$0xff]
    %v128 = vld [vmem:[#allocation6 + $0xb0] sm:$0xff]
    %v129 = vld [vmem:[#allocation6 + $0xb8] sm:$0xff]
    %v130 = vld [vmem:[#allocation6 + $0xc0] sm:$0xff]
    %v131 = vld [vmem:[#allocation6 + $0xc8] sm:$0xff]
    %v132 = vld [vmem:[#allocation6 + $0xd0] sm:$0xff]
    %v133 = vld [vmem:[#allocation6 + $0xd8] sm:$0xff]
    %v134 = vld [vmem:[#allocation8] sm:$0xff]
    %v135 = vld [vmem:[#allocation8 + $0x8] sm:$0x3f]
    %v138 = vperm.slane %v134, 0
    %v139 = vperm.slane %v134, 1
    %v140 = vperm.slane %v134, 2
    %v141 = vperm.slane %v134, 3
    %v142 = vperm.slane %v134, 4
    %v143 = vperm.slane %v134, 5
    %v144 = vperm.slane %v134, 6
    %v145 = vperm.slane %v134, 7
    %v146 = vperm.slane %v135, 0
    %v147 = vperm.slane %v135, 1
    %v148 = vperm.slane %v135, 2
    %v149 = vperm.slane %v135, 3
    %v150 = vperm.slane %v135, 4
    %v151 = vperm.slane %v135, 5
    %v194 = vunpack.c.l.b16 %v106
    %v195 = vunpack.c.h.b16 %v106
    %v196 = vunpack.c.l.b16 %v107
    %v197 = vunpack.c.h.b16 %v107
    %v198 = vunpack.c.l.b16 %v108
    %v199 = vunpack.c.h.b16 %v108
    %v200 = vunpack.c.l.b16 %v109
    %v201 = vunpack.c.h.b16 %v109
    %v202 = vunpack.c.l.b16 %v110
    %v203 = vunpack.c.h.b16 %v110
    %v204 = vunpack.c.l.b16 %v111
    %v205 = vunpack.c.h.b16 %v111
    %v206 = vunpack.c.l.b16 %v112
    %v207 = vunpack.c.h.b16 %v112
    %v208 = vunpack.c.l.b16 %v113
    %v209 = vunpack.c.h.b16 %v113
    %v210 = vunpack.c.l.b16 %v114
    %v211 = vunpack.c.h.b16 %v114
    %v212 = vunpack.c.l.b16 %v115
    %v213 = vunpack.c.h.b16 %v115
    %v214 = vunpack.c.l.b16 %v116
    %v215 = vunpack.c.h.b16 %v116
    %v216 = vunpack.c.l.b16 %v117
    %v217 = vunpack.c.h.b16 %v117
    %v218 = vunpack.c.l.b16 %v118
    %v219 = vunpack.c.h.b16 %v118
    %v220 = vunpack.c.l.b16 %v119
    %v221 = vunpack.c.h.b16 %v119
    %v222 = vunpack.c.l.b16 %v120
    %v223 = vunpack.c.h.b16 %v120
    %v224 = vunpack.c.l.b16 %v121
    %v225 = vunpack.c.h.b16 %v121
    %v226 = vunpack.c.l.b16 %v122
    %v227 = vunpack.c.h.b16 %v122
    %v228 = vunpack.c.l.b16 %v123
    %v229 = vunpack.c.h.b16 %v123
    %v230 = vunpack.c.l.b16 %v124
    %v231 = vunpack.c.h.b16 %v124
    %v232 = vunpack.c.l.b16 %v125
    %v233 = vunpack.c.h.b16 %v125
    %v234 = vunpack.c.l.b16 %v126
    %v235 = vunpack.c.h.b16 %v126
    %v236 = vunpack.c.l.b16 %v127
    %v237 = vunpack.c.h.b16 %v127
    %v238 = vunpack.c.l.b16 %v128
    %v239 = vunpack.c.h.b16 %v128
    %v240 = vunpack.c.l.b16 %v129
    %v241 = vunpack.c.h.b16 %v129
    %v242 = vunpack.c.l.b16 %v130
    %v243 = vunpack.c.h.b16 %v130
    %v244 = vunpack.c.l.b16 %v131
    %v245 = vunpack.c.h.b16 %v131
    %v246 = vunpack.c.l.b16 %v132
    %v247 = vunpack.c.h.b16 %v132
    %v248 = vunpack.c.l.b16 %v133
    %v249 = vunpack.c.h.b16 %v133
    %v250 = vpack.c.b16 %v208, %v194
    %v251 = vpack.c.b16 %v209, %v195
    %v252 = vpack.c.b16 %v210, %v196
    %v253 = vpack.c.b16 %v211, %v197
    %v254 = vpack.c.b16 %v212, %v198
    %v255 = vpack.c.b16 %v213, %v199
    %v256 = vpack.c.b16 %v214, %v200
    %v257 = vpack.c.b16 %v215, %v201
    %v258 = vpack.c.b16 %v216, %v202
    %v259 = vpack.c.b16 %v217, %v203
    %v260 = vpack.c.b16 %v218, %v204
    %v261 = vpack.c.b16 %v219, %v205
    %v262 = vpack.c.b16 %v220, %v206
    %v263 = vpack.c.b16 %v221, %v207
    %v264 = vpack.c.b16 %v236, %v222
    %v265 = vpack.c.b16 %v237, %v223
    %v266 = vpack.c.b16 %v238, %v224
    %v267 = vpack.c.b16 %v239, %v225
    %v268 = vpack.c.b16 %v240, %v226
    %v269 = vpack.c.b16 %v241, %v227
    %v270 = vpack.c.b16 %v242, %v228
    %v271 = vpack.c.b16 %v243, %v229
    %v272 = vpack.c.b16 %v244, %v230
    %v273 = vpack.c.b16 %v245, %v231
    %v274 = vpack.c.b16 %v246, %v232
    %v275 = vpack.c.b16 %v247, %v233
    %v276 = vpack.c.b16 %v248, %v234
    %v277 = vpack.c.b16 %v249, %v235
    %vm306 = vcmask 261120
    %v308 = vsel %vm306, %v105, 0
    %310 = vmatpush.bf16.msra.mxu0 0
    %311 = vmatpush.bf16.msra.mxu0 0
    %312 = vmatpush.bf16.msra.mxu0 0
    %313 = vmatpush.bf16.msra.mxu0 0
    %314 = vmatpush.bf16.msra.mxu0 0
    %315 = vmatpush.bf16.msra.mxu0 0
    %316 = vmatpush.bf16.msra.mxu0 %v264
    %317 = vmatpush.bf16.msra.mxu0 %v250
    %318 = vmatmul.bf16.gmra.mxu0 %v308
    %v319 = vpop.f32.mrf.mxu0
    %v320 = vadd.f32 %v138, %v319
    %v321 = vpop.f32.mrf.mxu0
    %322 = vdwg.mxu0
    %323 = vmatpush.bf16.msra.mxu0 0
    %324 = vmatpush.bf16.msra.mxu0 0
    %325 = vmatpush.bf16.msra.mxu0 0
    %326 = vmatpush.bf16.msra.mxu0 0
    %327 = vmatpush.bf16.msra.mxu0 0
    %328 = vmatpush.bf16.msra.mxu0 0
    %329 = vmatpush.bf16.msra.mxu0 %v265
    %330 = vmatpush.bf16.msra.mxu0 %v251
    %331 = vmatmul.bf16.gmra.mxu0 %v308
    %v332 = vpop.f32.mrf.mxu0
    %v333 = vadd.f32 %v139, %v332
    %v334 = vpop.f32.mrf.mxu0
    %335 = vdwg.mxu0
    %336 = vmatpush.bf16.msra.mxu0 0
    %337 = vmatpush.bf16.msra.mxu0 0
    %338 = vmatpush.bf16.msra.mxu0 0
    %339 = vmatpush.bf16.msra.mxu0 0
    %340 = vmatpush.bf16.msra.mxu0 0
    %341 = vmatpush.bf16.msra.mxu0 0
    %342 = vmatpush.bf16.msra.mxu0 %v266
    %343 = vmatpush.bf16.msra.mxu0 %v252
    %344 = vmatmul.bf16.gmra.mxu0 %v308
    %v345 = vpop.f32.mrf.mxu0
    %v346 = vadd.f32 %v140, %v345
    %v347 = vpop.f32.mrf.mxu0
    %348 = vdwg.mxu0
    %349 = vmatpush.bf16.msra.mxu0 0
    %350 = vmatpush.bf16.msra.mxu0 0
    %351 = vmatpush.bf16.msra.mxu0 0
    %352 = vmatpush.bf16.msra.mxu0 0
    %353 = vmatpush.bf16.msra.mxu0 0
    %354 = vmatpush.bf16.msra.mxu0 0
    %355 = vmatpush.bf16.msra.mxu0 %v267
    %356 = vmatpush.bf16.msra.mxu0 %v253
    %357 = vmatmul.bf16.gmra.mxu0 %v308
    %v358 = vpop.f32.mrf.mxu0
    %v359 = vadd.f32 %v141, %v358
    %v360 = vpop.f32.mrf.mxu0
    %361 = vdwg.mxu0
    %362 = vmatpush.bf16.msra.mxu0 0
    %363 = vmatpush.bf16.msra.mxu0 0
    %364 = vmatpush.bf16.msra.mxu0 0
    %365 = vmatpush.bf16.msra.mxu0 0
    %366 = vmatpush.bf16.msra.mxu0 0
    %367 = vmatpush.bf16.msra.mxu0 0
    %368 = vmatpush.bf16.msra.mxu0 %v268
    %369 = vmatpush.bf16.msra.mxu0 %v254
    %370 = vmatmul.bf16.gmra.mxu0 %v308
    %v371 = vpop.f32.mrf.mxu0
    %v372 = vadd.f32 %v142, %v371
    %v373 = vpop.f32.mrf.mxu0
    %374 = vdwg.mxu0
    %375 = vmatpush.bf16.msra.mxu0 0
    %376 = vmatpush.bf16.msra.mxu0 0
    %377 = vmatpush.bf16.msra.mxu0 0
    %378 = vmatpush.bf16.msra.mxu0 0
    %379 = vmatpush.bf16.msra.mxu0 0
    %380 = vmatpush.bf16.msra.mxu0 0
    %381 = vmatpush.bf16.msra.mxu0 %v269
    %382 = vmatpush.bf16.msra.mxu0 %v255
    %383 = vmatmul.bf16.gmra.mxu0 %v308
    %v384 = vpop.f32.mrf.mxu0
    %v385 = vadd.f32 %v143, %v384
    %v386 = vpop.f32.mrf.mxu0
    %387 = vdwg.mxu0
    %388 = vmatpush.bf16.msra.mxu0 0
    %389 = vmatpush.bf16.msra.mxu0 0
    %390 = vmatpush.bf16.msra.mxu0 0
    %391 = vmatpush.bf16.msra.mxu0 0
    %392 = vmatpush.bf16.msra.mxu0 0
    %393 = vmatpush.bf16.msra.mxu0 0
    %394 = vmatpush.bf16.msra.mxu0 %v270
    %395 = vmatpush.bf16.msra.mxu0 %v256
    %396 = vmatmul.bf16.gmra.mxu0 %v308
    %v397 = vpop.f32.mrf.mxu0
    %v398 = vadd.f32 %v144, %v397
    %v399 = vpop.f32.mrf.mxu0
    %400 = vdwg.mxu0
    %401 = vmatpush.bf16.msra.mxu0 0
    %402 = vmatpush.bf16.msra.mxu0 0
    %403 = vmatpush.bf16.msra.mxu0 0
    %404 = vmatpush.bf16.msra.mxu0 0
    %405 = vmatpush.bf16.msra.mxu0 0
    %406 = vmatpush.bf16.msra.mxu0 0
    %407 = vmatpush.bf16.msra.mxu0 %v271
    %408 = vmatpush.bf16.msra.mxu0 %v257
    %409 = vmatmul.bf16.gmra.mxu0 %v308
    %v410 = vpop.f32.mrf.mxu0
    %v411 = vadd.f32 %v145, %v410
    %v412 = vpop.f32.mrf.mxu0
    %413 = vdwg.mxu0
    %414 = vmatpush.bf16.msra.mxu0 0
    %415 = vmatpush.bf16.msra.mxu0 0
    %416 = vmatpush.bf16.msra.mxu0 0
    %417 = vmatpush.bf16.msra.mxu0 0
    %418 = vmatpush.bf16.msra.mxu0 0
    %419 = vmatpush.bf16.msra.mxu0 0
    %420 = vmatpush.bf16.msra.mxu0 %v272
    %421 = vmatpush.bf16.msra.mxu0 %v258
    %422 = vmatmul.bf16.gmra.mxu0 %v308
    %v423 = vpop.f32.mrf.mxu0
    %v424 = vadd.f32 %v146, %v423
    %v425 = vpop.f32.mrf.mxu0
    %426 = vdwg.mxu0
    %427 = vmatpush.bf16.msra.mxu0 0
    %428 = vmatpush.bf16.msra.mxu0 0
    %429 = vmatpush.bf16.msra.mxu0 0
    %430 = vmatpush.bf16.msra.mxu0 0
    %431 = vmatpush.bf16.msra.mxu0 0
    %432 = vmatpush.bf16.msra.mxu0 0
    %433 = vmatpush.bf16.msra.mxu0 %v273
    %434 = vmatpush.bf16.msra.mxu0 %v259
    %435 = vmatmul.bf16.gmra.mxu0 %v308
    %v436 = vpop.f32.mrf.mxu0
    %v437 = vadd.f32 %v147, %v436
    %v438 = vpop.f32.mrf.mxu0
    %439 = vdwg.mxu0
    %440 = vmatpush.bf16.msra.mxu0 0
    %441 = vmatpush.bf16.msra.mxu0 0
    %442 = vmatpush.bf16.msra.mxu0 0
    %443 = vmatpush.bf16.msra.mxu0 0
    %444 = vmatpush.bf16.msra.mxu0 0
    %445 = vmatpush.bf16.msra.mxu0 0
    %446 = vmatpush.bf16.msra.mxu0 %v274
    %447 = vmatpush.bf16.msra.mxu0 %v260
    %448 = vmatmul.bf16.gmra.mxu0 %v308
    %v449 = vpop.f32.mrf.mxu0
    %v450 = vadd.f32 %v148, %v449
    %v451 = vpop.f32.mrf.mxu0
    %452 = vdwg.mxu0
    %453 = vmatpush.bf16.msra.mxu0 0
    %454 = vmatpush.bf16.msra.mxu0 0
    %455 = vmatpush.bf16.msra.mxu0 0
    %456 = vmatpush.bf16.msra.mxu0 0
    %457 = vmatpush.bf16.msra.mxu0 0
    %458 = vmatpush.bf16.msra.mxu0 0
    %459 = vmatpush.bf16.msra.mxu0 %v275
    %460 = vmatpush.bf16.msra.mxu0 %v261
    %461 = vmatmul.bf16.gmra.mxu0 %v308
    %v462 = vpop.f32.mrf.mxu0
    %v463 = vadd.f32 %v149, %v462
    %v464 = vpop.f32.mrf.mxu0
    %465 = vdwg.mxu0
    %466 = vmatpush.bf16.msra.mxu0 0
    %467 = vmatpush.bf16.msra.mxu0 0
    %468 = vmatpush.bf16.msra.mxu0 0
    %469 = vmatpush.bf16.msra.mxu0 0
    %470 = vmatpush.bf16.msra.mxu0 0
    %471 = vmatpush.bf16.msra.mxu0 0
    %472 = vmatpush.bf16.msra.mxu0 %v276
    %473 = vmatpush.bf16.msra.mxu0 %v262
    %474 = vmatmul.bf16.gmra.mxu0 %v308
    %v475 = vpop.f32.mrf.mxu0
    %v476 = vadd.f32 %v150, %v475
    %v477 = vpop.f32.mrf.mxu0
    %478 = vdwg.mxu0
    %479 = vmatpush.bf16.msra.mxu0 0
    %480 = vmatpush.bf16.msra.mxu0 0
    %481 = vmatpush.bf16.msra.mxu0 0
    %482 = vmatpush.bf16.msra.mxu0 0
    %483 = vmatpush.bf16.msra.mxu0 0
    %484 = vmatpush.bf16.msra.mxu0 0
    %485 = vmatpush.bf16.msra.mxu0 %v277
    %486 = vmatpush.bf16.msra.mxu0 %v263
    %487 = vmatmul.bf16.gmra.mxu0 %v308
    %v488 = vpop.f32.mrf.mxu0
    %v489 = vadd.f32 %v151, %v488
    %v490 = vpop.f32.mrf.mxu0
    %491 = vdwg.mxu0
    %v492 = vpack.c.bf16 %v333, %v320
    %v493 = vpack.c.bf16 %v359, %v346
    %v494 = vpack.c.bf16 %v385, %v372
    %v495 = vpack.c.bf16 %v411, %v398
    %v496 = vpack.c.bf16 %v437, %v424
    %v497 = vpack.c.bf16 %v463, %v450
    %v498 = vpack.c.bf16 %v489, %v476
    %v499 = vunpack.c.l.bf16 %v492
    %v500 = vunpack.c.h.bf16 %v492
    %v501 = vunpack.c.l.bf16 %v493
    %v502 = vunpack.c.h.bf16 %v493
    %v503 = vunpack.c.l.bf16 %v494
    %v504 = vunpack.c.h.bf16 %v494
    %v505 = vunpack.c.l.bf16 %v495
    %v506 = vunpack.c.h.bf16 %v495
    %v507 = vunpack.c.l.bf16 %v496
    %v508 = vunpack.c.h.bf16 %v496
    %v509 = vunpack.c.l.bf16 %v497
    %v510 = vunpack.c.h.bf16 %v497
    %v511 = vunpack.c.l.bf16 %v498
    %v512 = vunpack.c.h.bf16 %v498
    %v513 = vtanh.pop %v499
    %v514 = vtanh.pop %v500
    %v515 = vtanh.pop %v501
    %v516 = vtanh.pop %v502
    %v517 = vtanh.pop %v503
    %v518 = vtanh.pop %v504
    %v519 = vtanh.pop %v505
    %v520 = vtanh.pop %v506
    %v521 = vtanh.pop %v507
    %v522 = vtanh.pop %v508
    %v523 = vtanh.pop %v509
    %v524 = vtanh.pop %v510
    %v525 = vtanh.pop %v511
    %v526 = vtanh.pop %v512
    %v527 = vpack.c.bf16 %v514, %v513
    %v528 = vpack.c.bf16 %v516, %v515
    %v529 = vpack.c.bf16 %v518, %v517
    %v530 = vpack.c.bf16 %v520, %v519
    %v531 = vpack.c.bf16 %v522, %v521
    %v532 = vpack.c.bf16 %v524, %v523
    %v533 = vpack.c.bf16 %v526, %v525
    %v534 = vunpack.c.l.bf16 %v527
    %v535 = vunpack.c.h.bf16 %v527
    %v536 = vunpack.c.l.bf16 %v528
    %v537 = vunpack.c.h.bf16 %v528
    %v538 = vunpack.c.l.bf16 %v529
    %v539 = vunpack.c.h.bf16 %v529
    %v540 = vunpack.c.l.bf16 %v530
    %v541 = vunpack.c.h.bf16 %v530
    %v542 = vunpack.c.l.bf16 %v531
    %v543 = vunpack.c.h.bf16 %v531
    %v544 = vunpack.c.l.bf16 %v532
    %v545 = vunpack.c.h.bf16 %v532
    %v546 = vunpack.c.l.bf16 %v533
    %v547 = vunpack.c.h.bf16 %v533
    %v548 = vtanh.pop %v534
    %v549 = vtanh.pop %v535
    %v550 = vtanh.pop %v536
    %v551 = vtanh.pop %v537
    %v552 = vtanh.pop %v538
    %v553 = vtanh.pop %v539
    %v554 = vtanh.pop %v540
    %v555 = vtanh.pop %v541
    %v556 = vtanh.pop %v542
    %v557 = vtanh.pop %v543
    %v558 = vtanh.pop %v544
    %v559 = vtanh.pop %v545
    %v560 = vtanh.pop %v546
    %v561 = vtanh.pop %v547
    %v562 = vpack.c.bf16 %v549, %v548
    %v563 = vpack.c.bf16 %v551, %v550
    %v564 = vpack.c.bf16 %v553, %v552
    %v565 = vpack.c.bf16 %v555, %v554
    %v566 = vpack.c.bf16 %v557, %v556
    %v567 = vpack.c.bf16 %v559, %v558
    %v568 = vpack.c.bf16 %v561, %v560
    %v569 = vld [vmem:[#allocation9] sm:$0xff]
    %v570 = vld [vmem:[#allocation9 + $0x8] sm:$0xff]
    %v571 = vld [vmem:[#allocation9 + $0x10] sm:$0xff]
    %v572 = vld [vmem:[#allocation9 + $0x18] sm:$0xff]
    %v573 = vld [vmem:[#allocation9 + $0x20] sm:$0xff]
    %v574 = vld [vmem:[#allocation9 + $0x28] sm:$0xff]
    %v575 = vld [vmem:[#allocation9 + $0x30] sm:$0xff]
    %v576 = vld [vmem:[#allocation9 + $0x38] sm:$0xff]
    %v577 = vld [vmem:[#allocation9 + $0x40] sm:$0xff]
    %v578 = vld [vmem:[#allocation9 + $0x48] sm:$0xff]
    %v579 = vld [vmem:[#allocation9 + $0x50] sm:$0xff]
    %v580 = vld [vmem:[#allocation9 + $0x58] sm:$0xff]
    %v581 = vld [vmem:[#allocation9 + $0x60] sm:$0xff]
    %v582 = vld [vmem:[#allocation9 + $0x68] sm:$0xff]
    %v583 = vld [vmem:[#allocation9 + $0x70] sm:$0xff]
    %v584 = vld [vmem:[#allocation9 + $0x78] sm:$0xff]
    %v585 = vld [vmem:[#allocation9 + $0x80] sm:$0xff]
    %v586 = vld [vmem:[#allocation9 + $0x88] sm:$0xff]
    %v587 = vld [vmem:[#allocation9 + $0x90] sm:$0xff]
    %v588 = vld [vmem:[#allocation9 + $0x98] sm:$0xff]
    %v589 = vld [vmem:[#allocation9 + $0xa0] sm:$0xff]
    %v590 = vld [vmem:[#allocation9 + $0xa8] sm:$0xff]
    %v591 = vld [vmem:[#allocation9 + $0xb0] sm:$0xff]
    %v592 = vld [vmem:[#allocation9 + $0xb8] sm:$0xff]
    %v593 = vld [vmem:[#allocation9 + $0xc0] sm:$0xff]
    %v594 = vld [vmem:[#allocation9 + $0xc8] sm:$0xff]
    %v595 = vld [vmem:[#allocation9 + $0xd0] sm:$0xff]
    %v596 = vld [vmem:[#allocation9 + $0xd8] sm:$0xff]
    %v597 = vld [vmem:[#allocation9 + $0xe0] sm:$0xff]
    %v598 = vld [vmem:[#allocation9 + $0xe8] sm:$0xff]
    %v599 = vld [vmem:[#allocation9 + $0xf0] sm:$0xff]
    %v600 = vld [vmem:[#allocation9 + $0xf8] sm:$0xff]
    %v601 = vld [vmem:[#allocation9 + $0x100] sm:$0xff]
    %v602 = vld [vmem:[#allocation9 + $0x108] sm:$0xff]
    %v603 = vld [vmem:[#allocation9 + $0x110] sm:$0xff]
    %v604 = vld [vmem:[#allocation9 + $0x118] sm:$0xff]
    %v605 = vld [vmem:[#allocation9 + $0x120] sm:$0xff]
    %v606 = vld [vmem:[#allocation9 + $0x128] sm:$0xff]
    %v607 = vld [vmem:[#allocation9 + $0x130] sm:$0xff]
    %v608 = vld [vmem:[#allocation9 + $0x138] sm:$0xff]
    %v609 = vld [vmem:[#allocation9 + $0x140] sm:$0xff]
    %v610 = vld [vmem:[#allocation9 + $0x148] sm:$0xff]
    %v611 = vld [vmem:[#allocation9 + $0x150] sm:$0xff]
    %v612 = vld [vmem:[#allocation9 + $0x158] sm:$0xff]
    %v613 = vld [vmem:[#allocation9 + $0x160] sm:$0xff]
    %v614 = vld [vmem:[#allocation9 + $0x168] sm:$0xff]
    %v615 = vld [vmem:[#allocation9 + $0x170] sm:$0xff]
    %v616 = vld [vmem:[#allocation9 + $0x178] sm:$0xff]
    %v617 = vld [vmem:[#allocation9 + $0x180] sm:$0xff]
    %v618 = vld [vmem:[#allocation9 + $0x188] sm:$0xff]
    %v619 = vld [vmem:[#allocation9 + $0x190] sm:$0xff]
    %v620 = vld [vmem:[#allocation9 + $0x198] sm:$0xff]
    %v621 = vld [vmem:[#allocation9 + $0x1a0] sm:$0xff]
    %v622 = vld [vmem:[#allocation9 + $0x1a8] sm:$0xff]
    %v623 = vld [vmem:[#allocation9 + $0x1b0] sm:$0xff]
    %v624 = vld [vmem:[#allocation9 + $0x1b8] sm:$0xff]
    %v625 = vld [vmem:[#allocation9 + $0x1c0] sm:$0xff]
    %v626 = vld [vmem:[#allocation9 + $0x1c8] sm:$0xff]
    %v627 = vld [vmem:[#allocation9 + $0x1d0] sm:$0xff]
    %v628 = vld [vmem:[#allocation9 + $0x1d8] sm:$0xff]
    %v629 = vld [vmem:[#allocation9 + $0x1e0] sm:$0xff]
    %v630 = vld [vmem:[#allocation9 + $0x1e8] sm:$0xff]
    %v631 = vld [vmem:[#allocation9 + $0x1f0] sm:$0xff]
    %v632 = vld [vmem:[#allocation9 + $0x1f8] sm:$0xff]
    %v633 = vld [vmem:[#allocation9 + $0x200] sm:$0xff]
    %v634 = vld [vmem:[#allocation9 + $0x208] sm:$0xff]
    %v635 = vld [vmem:[#allocation9 + $0x210] sm:$0xff]
    %v636 = vld [vmem:[#allocation9 + $0x218] sm:$0xff]
    %v637 = vld [vmem:[#allocation9 + $0x220] sm:$0xff]
    %v638 = vld [vmem:[#allocation9 + $0x228] sm:$0xff]
    %v639 = vld [vmem:[#allocation9 + $0x230] sm:$0xff]
    %v640 = vld [vmem:[#allocation9 + $0x238] sm:$0xff]
    %v641 = vld [vmem:[#allocation9 + $0x240] sm:$0xff]
    %v642 = vld [vmem:[#allocation9 + $0x248] sm:$0xff]
    %v643 = vld [vmem:[#allocation9 + $0x250] sm:$0xff]
    %v644 = vld [vmem:[#allocation9 + $0x258] sm:$0xff]
    %v645 = vld [vmem:[#allocation9 + $0x260] sm:$0xff]
    %v646 = vld [vmem:[#allocation9 + $0x268] sm:$0xff]
    %v647 = vld [vmem:[#allocation9 + $0x270] sm:$0xff]
    %v648 = vld [vmem:[#allocation9 + $0x278] sm:$0xff]
    %v649 = vld [vmem:[#allocation9 + $0x280] sm:$0xff]
    %v650 = vld [vmem:[#allocation9 + $0x288] sm:$0xff]
    %v651 = vld [vmem:[#allocation9 + $0x290] sm:$0xff]
    %v652 = vld [vmem:[#allocation9 + $0x298] sm:$0xff]
    %v653 = vld [vmem:[#allocation9 + $0x2a0] sm:$0xff]
    %v654 = vld [vmem:[#allocation9 + $0x2a8] sm:$0xff]
    %v655 = vld [vmem:[#allocation9 + $0x2b0] sm:$0xff]
    %v656 = vld [vmem:[#allocation9 + $0x2b8] sm:$0xff]
    %v657 = vld [vmem:[#allocation9 + $0x2c0] sm:$0xff]
    %v658 = vld [vmem:[#allocation9 + $0x2c8] sm:$0xff]
    %v659 = vld [vmem:[#allocation9 + $0x2d0] sm:$0xff]
    %v660 = vld [vmem:[#allocation9 + $0x2d8] sm:$0xff]
    %v661 = vld [vmem:[#allocation9 + $0x2e0] sm:$0xff]
    %v662 = vld [vmem:[#allocation9 + $0x2e8] sm:$0xff]
    %v663 = vld [vmem:[#allocation9 + $0x2f0] sm:$0xff]
    %v664 = vld [vmem:[#allocation9 + $0x2f8] sm:$0xff]
    %v665 = vld [vmem:[#allocation9 + $0x300] sm:$0xff]
    %v666 = vld [vmem:[#allocation9 + $0x308] sm:$0xff]
    %v667 = vld [vmem:[#allocation9 + $0x310] sm:$0xff]
    %v668 = vld [vmem:[#allocation9 + $0x318] sm:$0xff]
    %v669 = vld [vmem:[#allocation9 + $0x320] sm:$0xff]
    %v670 = vld [vmem:[#allocation9 + $0x328] sm:$0xff]
    %v671 = vld [vmem:[#allocation9 + $0x330] sm:$0xff]
    %v672 = vld [vmem:[#allocation9 + $0x338] sm:$0xff]
    %v673 = vld [vmem:[#allocation9 + $0x340] sm:$0xff]
    %v674 = vld [vmem:[#allocation9 + $0x348] sm:$0xff]
    %v675 = vld [vmem:[#allocation9 + $0x350] sm:$0xff]
    %v676 = vld [vmem:[#allocation9 + $0x358] sm:$0xff]
    %v677 = vld [vmem:[#allocation9 + $0x360] sm:$0xff]
    %v678 = vld [vmem:[#allocation9 + $0x368] sm:$0xff]
    %v679 = vld [vmem:[#allocation9 + $0x370] sm:$0xff]
    %v680 = vld [vmem:[#allocation9 + $0x378] sm:$0xff]
    %v681 = vld [vmem:[%s4] sm:$0x3]
    %v683 = vperm.slane %v681, 0
    %v684 = vperm.slane %v681, 1
    %v691 = vunpack.c.l.b16 %v562
    %v692 = vunpack.c.h.b16 %v562
    %v693 = vunpack.c.l.b16 %v563
    %v694 = vunpack.c.h.b16 %v563
    %v695 = vunpack.c.l.b16 %v564
    %v696 = vunpack.c.h.b16 %v564
    %v697 = vunpack.c.l.b16 %v565
    %v698 = vpack.c.b16 %v691, %v691
    %v699 = vpack.c.b16 %v692, %v692
    %v700 = vpack.c.b16 %v693, %v693
    %v701 = vpack.c.b16 %v694, %v694
    %v702 = vpack.c.b16 %v695, %v695
    %v703 = vpack.c.b16 %v696, %v696
    %v704 = vpack.c.b16 %v697, %v697
    %v824 = vunpack.c.l.b16 %v569
    %v825 = vunpack.c.h.b16 %v569
    %v826 = vunpack.c.l.b16 %v570
    %v827 = vunpack.c.h.b16 %v570
    %v828 = vunpack.c.l.b16 %v571
    %v829 = vunpack.c.h.b16 %v571
    %v830 = vunpack.c.l.b16 %v572
    %v831 = vunpack.c.h.b16 %v572
    %v832 = vunpack.c.l.b16 %v573
    %v833 = vunpack.c.h.b16 %v573
    %v834 = vunpack.c.l.b16 %v574
    %v835 = vunpack.c.h.b16 %v574
    %v836 = vunpack.c.l.b16 %v575
    %v837 = vunpack.c.h.b16 %v575
    %v838 = vunpack.c.l.b16 %v576
    %v839 = vunpack.c.h.b16 %v576
    %v840 = vunpack.c.l.b16 %v577
    %v841 = vunpack.c.h.b16 %v577
    %v842 = vunpack.c.l.b16 %v578
    %v843 = vunpack.c.h.b16 %v578
    %v844 = vunpack.c.l.b16 %v579
    %v845 = vunpack.c.h.b16 %v579
    %v846 = vunpack.c.l.b16 %v580
    %v847 = vunpack.c.h.b16 %v580
    %v848 = vunpack.c.l.b16 %v581
    %v849 = vunpack.c.h.b16 %v581
    %v850 = vunpack.c.l.b16 %v582
    %v851 = vunpack.c.h.b16 %v582
    %v852 = vunpack.c.l.b16 %v583
    %v853 = vunpack.c.h.b16 %v583
    %v854 = vunpack.c.l.b16 %v584
    %v855 = vunpack.c.h.b16 %v584
    %v856 = vunpack.c.l.b16 %v585
    %v857 = vunpack.c.h.b16 %v585
    %v858 = vunpack.c.l.b16 %v586
    %v859 = vunpack.c.h.b16 %v586
    %v860 = vunpack.c.l.b16 %v587
    %v861 = vunpack.c.h.b16 %v587
    %v862 = vunpack.c.l.b16 %v588
    %v863 = vunpack.c.h.b16 %v588
    %v864 = vunpack.c.l.b16 %v589
    %v865 = vunpack.c.h.b16 %v589
    %v866 = vunpack.c.l.b16 %v590
    %v867 = vunpack.c.h.b16 %v590
    %v868 = vunpack.c.l.b16 %v591
    %v869 = vunpack.c.h.b16 %v591
    %v870 = vunpack.c.l.b16 %v592
    %v871 = vunpack.c.h.b16 %v592
    %v872 = vunpack.c.l.b16 %v593
    %v873 = vunpack.c.h.b16 %v593
    %v874 = vunpack.c.l.b16 %v594
    %v875 = vunpack.c.h.b16 %v594
    %v876 = vunpack.c.l.b16 %v595
    %v877 = vunpack.c.h.b16 %v595
    %v878 = vunpack.c.l.b16 %v596
    %v879 = vunpack.c.h.b16 %v596
    %v880 = vunpack.c.l.b16 %v597
    %v881 = vunpack.c.h.b16 %v597
    %v882 = vunpack.c.l.b16 %v598
    %v883 = vunpack.c.h.b16 %v598
    %v884 = vunpack.c.l.b16 %v599
    %v885 = vunpack.c.h.b16 %v599
    %v886 = vunpack.c.l.b16 %v600
    %v887 = vunpack.c.h.b16 %v600
    %v888 = vunpack.c.l.b16 %v601
    %v889 = vunpack.c.h.b16 %v601
    %v890 = vunpack.c.l.b16 %v602
    %v891 = vunpack.c.h.b16 %v602
    %v892 = vunpack.c.l.b16 %v603
    %v893 = vunpack.c.h.b16 %v603
    %v894 = vunpack.c.l.b16 %v604
    %v895 = vunpack.c.h.b16 %v604
    %v896 = vunpack.c.l.b16 %v605
    %v897 = vunpack.c.h.b16 %v605
    %v898 = vunpack.c.l.b16 %v606
    %v899 = vunpack.c.h.b16 %v606
    %v900 = vunpack.c.l.b16 %v607
    %v901 = vunpack.c.h.b16 %v607
    %v902 = vunpack.c.l.b16 %v608
    %v903 = vunpack.c.h.b16 %v608
    %v904 = vunpack.c.l.b16 %v609
    %v905 = vunpack.c.h.b16 %v609
    %v906 = vunpack.c.l.b16 %v610
    %v907 = vunpack.c.h.b16 %v610
    %v908 = vunpack.c.l.b16 %v611
    %v909 = vunpack.c.h.b16 %v611
    %v910 = vunpack.c.l.b16 %v612
    %v911 = vunpack.c.h.b16 %v612
    %v912 = vunpack.c.l.b16 %v613
    %v913 = vunpack.c.h.b16 %v613
    %v914 = vunpack.c.l.b16 %v614
    %v915 = vunpack.c.h.b16 %v614
    %v916 = vunpack.c.l.b16 %v615
    %v917 = vunpack.c.h.b16 %v615
    %v918 = vunpack.c.l.b16 %v616
    %v919 = vunpack.c.h.b16 %v616
    %v920 = vunpack.c.l.b16 %v617
    %v921 = vunpack.c.h.b16 %v617
    %v922 = vunpack.c.l.b16 %v618
    %v923 = vunpack.c.h.b16 %v618
    %v924 = vunpack.c.l.b16 %v619
    %v925 = vunpack.c.h.b16 %v619
    %v926 = vunpack.c.l.b16 %v620
    %v927 = vunpack.c.h.b16 %v620
    %v928 = vunpack.c.l.b16 %v621
    %v929 = vunpack.c.h.b16 %v621
    %v930 = vunpack.c.l.b16 %v622
    %v931 = vunpack.c.h.b16 %v622
    %v932 = vunpack.c.l.b16 %v623
    %v933 = vunpack.c.h.b16 %v623
    %v934 = vunpack.c.l.b16 %v624
    %v935 = vunpack.c.h.b16 %v624
    %v936 = vunpack.c.l.b16 %v625
    %v937 = vunpack.c.h.b16 %v625
    %v938 = vunpack.c.l.b16 %v626
    %v939 = vunpack.c.h.b16 %v626
    %v940 = vunpack.c.l.b16 %v627
    %v941 = vunpack.c.h.b16 %v627
    %v942 = vunpack.c.l.b16 %v628
    %v943 = vunpack.c.h.b16 %v628
    %v944 = vunpack.c.l.b16 %v629
    %v945 = vunpack.c.h.b16 %v629
    %v946 = vunpack.c.l.b16 %v630
    %v947 = vunpack.c.h.b16 %v630
    %v948 = vunpack.c.l.b16 %v631
    %v949 = vunpack.c.h.b16 %v631
    %v950 = vunpack.c.l.b16 %v632
    %v951 = vunpack.c.h.b16 %v632
    %v952 = vunpack.c.l.b16 %v633
    %v953 = vunpack.c.h.b16 %v633
    %v954 = vunpack.c.l.b16 %v634
    %v955 = vunpack.c.h.b16 %v634
    %v956 = vunpack.c.l.b16 %v635
    %v957 = vunpack.c.h.b16 %v635
    %v958 = vunpack.c.l.b16 %v636
    %v959 = vunpack.c.h.b16 %v636
    %v960 = vunpack.c.l.b16 %v637
    %v961 = vunpack.c.h.b16 %v637
    %v962 = vunpack.c.l.b16 %v638
    %v963 = vunpack.c.h.b16 %v638
    %v964 = vunpack.c.l.b16 %v639
    %v965 = vunpack.c.h.b16 %v639
    %v966 = vunpack.c.l.b16 %v640
    %v967 = vunpack.c.h.b16 %v640
    %v968 = vunpack.c.l.b16 %v641
    %v969 = vunpack.c.h.b16 %v641
    %v970 = vunpack.c.l.b16 %v642
    %v971 = vunpack.c.h.b16 %v642
    %v972 = vunpack.c.l.b16 %v643
    %v973 = vunpack.c.h.b16 %v643
    %v974 = vunpack.c.l.b16 %v644
    %v975 = vunpack.c.h.b16 %v644
    %v976 = vunpack.c.l.b16 %v645
    %v977 = vunpack.c.h.b16 %v645
    %v978 = vunpack.c.l.b16 %v646
    %v979 = vunpack.c.h.b16 %v646
    %v980 = vunpack.c.l.b16 %v647
    %v981 = vunpack.c.h.b16 %v647
    %v982 = vunpack.c.l.b16 %v648
    %v983 = vunpack.c.h.b16 %v648
    %v984 = vunpack.c.l.b16 %v649
    %v985 = vunpack.c.h.b16 %v649
    %v986 = vunpack.c.l.b16 %v650
    %v987 = vunpack.c.h.b16 %v650
    %v988 = vunpack.c.l.b16 %v651
    %v989 = vunpack.c.h.b16 %v651
    %v990 = vunpack.c.l.b16 %v652
    %v991 = vunpack.c.h.b16 %v652
    %v992 = vunpack.c.l.b16 %v653
    %v993 = vunpack.c.h.b16 %v653
    %v994 = vunpack.c.l.b16 %v654
    %v995 = vunpack.c.h.b16 %v654
    %v996 = vunpack.c.l.b16 %v655
    %v997 = vunpack.c.h.b16 %v655
    %v998 = vunpack.c.l.b16 %v656
    %v999 = vunpack.c.h.b16 %v656
    %v1000 = vunpack.c.l.b16 %v657
    %v1001 = vunpack.c.h.b16 %v657
    %v1002 = vunpack.c.l.b16 %v658
    %v1003 = vunpack.c.h.b16 %v658
    %v1004 = vunpack.c.l.b16 %v659
    %v1005 = vunpack.c.h.b16 %v659
    %v1006 = vunpack.c.l.b16 %v660
    %v1007 = vunpack.c.h.b16 %v660
    %v1008 = vunpack.c.l.b16 %v661
    %v1009 = vunpack.c.h.b16 %v661
    %v1010 = vunpack.c.l.b16 %v662
    %v1011 = vunpack.c.h.b16 %v662
    %v1012 = vunpack.c.l.b16 %v663
    %v1013 = vunpack.c.h.b16 %v663
    %v1014 = vunpack.c.l.b16 %v664
    %v1015 = vunpack.c.h.b16 %v664
    %v1016 = vunpack.c.l.b16 %v665
    %v1017 = vunpack.c.h.b16 %v665
    %v1018 = vunpack.c.l.b16 %v666
    %v1019 = vunpack.c.h.b16 %v666
    %v1020 = vunpack.c.l.b16 %v667
    %v1021 = vunpack.c.h.b16 %v667
    %v1022 = vunpack.c.l.b16 %v668
    %v1023 = vunpack.c.h.b16 %v668
    %v1024 = vunpack.c.l.b16 %v669
    %v1025 = vunpack.c.h.b16 %v669
    %v1026 = vunpack.c.l.b16 %v670
    %v1027 = vunpack.c.h.b16 %v670
    %v1028 = vunpack.c.l.b16 %v671
    %v1029 = vunpack.c.h.b16 %v671
    %v1030 = vunpack.c.l.b16 %v672
    %v1031 = vunpack.c.h.b16 %v672
    %v1032 = vunpack.c.l.b16 %v673
    %v1033 = vunpack.c.h.b16 %v673
    %v1034 = vunpack.c.l.b16 %v674
    %v1035 = vunpack.c.h.b16 %v674
    %v1036 = vunpack.c.l.b16 %v675
    %v1037 = vunpack.c.h.b16 %v675
    %v1038 = vunpack.c.l.b16 %v676
    %v1039 = vunpack.c.h.b16 %v676
    %v1040 = vunpack.c.l.b16 %v677
    %v1041 = vunpack.c.h.b16 %v677
    %v1042 = vunpack.c.l.b16 %v678
    %v1043 = vunpack.c.h.b16 %v678
    %v1044 = vunpack.c.l.b16 %v679
    %v1045 = vunpack.c.h.b16 %v679
    %v1046 = vunpack.c.l.b16 %v680
    %v1047 = vunpack.c.h.b16 %v680
    %v1048 = vpack.c.b16 %v826, %v824
    %v1049 = vpack.c.b16 %v827, %v825
    %v1050 = vpack.c.b16 %v830, %v828
    %v1051 = vpack.c.b16 %v831, %v829
    %v1052 = vpack.c.b16 %v834, %v832
    %v1053 = vpack.c.b16 %v835, %v833
    %v1054 = vpack.c.b16 %v838, %v836
    %v1055 = vpack.c.b16 %v839, %v837
    %v1056 = vpack.c.b16 %v842, %v840
    %v1057 = vpack.c.b16 %v843, %v841
    %v1058 = vpack.c.b16 %v846, %v844
    %v1059 = vpack.c.b16 %v847, %v845
    %v1060 = vpack.c.b16 %v850, %v848
    %v1061 = vpack.c.b16 %v851, %v849
    %v1062 = vpack.c.b16 %v854, %v852
    %v1063 = vpack.c.b16 %v855, %v853
    %v1064 = vpack.c.b16 %v858, %v856
    %v1065 = vpack.c.b16 %v859, %v857
    %v1066 = vpack.c.b16 %v862, %v860
    %v1067 = vpack.c.b16 %v863, %v861
    %v1068 = vpack.c.b16 %v866, %v864
    %v1069 = vpack.c.b16 %v867, %v865
    %v1070 = vpack.c.b16 %v870, %v868
    %v1071 = vpack.c.b16 %v871, %v869
    %v1072 = vpack.c.b16 %v874, %v872
    %v1073 = vpack.c.b16 %v875, %v873
    %v1074 = vpack.c.b16 %v878, %v876
    %v1075 = vpack.c.b16 %v879, %v877
    %v1076 = vpack.c.b16 %v882, %v880
    %v1077 = vpack.c.b16 %v883, %v881
    %v1078 = vpack.c.b16 %v886, %v884
    %v1079 = vpack.c.b16 %v887, %v885
    %v1080 = vpack.c.b16 %v890, %v888
    %v1081 = vpack.c.b16 %v891, %v889
    %v1082 = vpack.c.b16 %v894, %v892
    %v1083 = vpack.c.b16 %v895, %v893
    %v1084 = vpack.c.b16 %v898, %v896
    %v1085 = vpack.c.b16 %v899, %v897
    %v1086 = vpack.c.b16 %v902, %v900
    %v1087 = vpack.c.b16 %v903, %v901
    %v1088 = vpack.c.b16 %v906, %v904
    %v1089 = vpack.c.b16 %v907, %v905
    %v1090 = vpack.c.b16 %v910, %v908
    %v1091 = vpack.c.b16 %v911, %v909
    %v1092 = vpack.c.b16 %v914, %v912
    %v1093 = vpack.c.b16 %v915, %v913
    %v1094 = vpack.c.b16 %v918, %v916
    %v1095 = vpack.c.b16 %v919, %v917
    %v1096 = vpack.c.b16 %v922, %v920
    %v1097 = vpack.c.b16 %v923, %v921
    %v1098 = vpack.c.b16 %v926, %v924
    %v1099 = vpack.c.b16 %v927, %v925
    %v1100 = vpack.c.b16 %v930, %v928
    %v1101 = vpack.c.b16 %v931, %v929
    %v1102 = vpack.c.b16 %v934, %v932
    %v1103 = vpack.c.b16 %v935, %v933
    %v1104 = vpack.c.b16 %v938, %v936
    %v1105 = vpack.c.b16 %v939, %v937
    %v1106 = vpack.c.b16 %v942, %v940
    %v1107 = vpack.c.b16 %v943, %v941
    %v1108 = vpack.c.b16 %v946, %v944
    %v1109 = vpack.c.b16 %v947, %v945
    %v1110 = vpack.c.b16 %v950, %v948
    %v1111 = vpack.c.b16 %v951, %v949
    %v1112 = vpack.c.b16 %v954, %v952
    %v1113 = vpack.c.b16 %v955, %v953
    %v1114 = vpack.c.b16 %v958, %v956
    %v1115 = vpack.c.b16 %v959, %v957
    %v1116 = vpack.c.b16 %v962, %v960
    %v1117 = vpack.c.b16 %v963, %v961
    %v1118 = vpack.c.b16 %v966, %v964
    %v1119 = vpack.c.b16 %v967, %v965
    %v1120 = vpack.c.b16 %v970, %v968
    %v1121 = vpack.c.b16 %v971, %v969
    %v1122 = vpack.c.b16 %v974, %v972
    %v1123 = vpack.c.b16 %v975, %v973
    %v1124 = vpack.c.b16 %v978, %v976
    %v1125 = vpack.c.b16 %v979, %v977
    %v1126 = vpack.c.b16 %v982, %v980
    %v1127 = vpack.c.b16 %v983, %v981
    %v1128 = vpack.c.b16 %v986, %v984
    %v1129 = vpack.c.b16 %v987, %v985
    %v1130 = vpack.c.b16 %v990, %v988
    %v1131 = vpack.c.b16 %v991, %v989
    %v1132 = vpack.c.b16 %v994, %v992
    %v1133 = vpack.c.b16 %v995, %v993
    %v1134 = vpack.c.b16 %v998, %v996
    %v1135 = vpack.c.b16 %v999, %v997
    %v1136 = vpack.c.b16 %v1002, %v1000
    %v1137 = vpack.c.b16 %v1003, %v1001
    %v1138 = vpack.c.b16 %v1006, %v1004
    %v1139 = vpack.c.b16 %v1007, %v1005
    %v1140 = vpack.c.b16 %v1010, %v1008
    %v1141 = vpack.c.b16 %v1011, %v1009
    %v1142 = vpack.c.b16 %v1014, %v1012
    %v1143 = vpack.c.b16 %v1015, %v1013
    %v1144 = vpack.c.b16 %v1018, %v1016
    %v1145 = vpack.c.b16 %v1019, %v1017
    %v1146 = vpack.c.b16 %v1022, %v1020
    %v1147 = vpack.c.b16 %v1023, %v1021
    %v1148 = vpack.c.b16 %v1026, %v1024
    %v1149 = vpack.c.b16 %v1027, %v1025
    %v1150 = vpack.c.b16 %v1030, %v1028
    %v1151 = vpack.c.b16 %v1031, %v1029
    %v1152 = vpack.c.b16 %v1034, %v1032
    %v1153 = vpack.c.b16 %v1035, %v1033
    %v1154 = vpack.c.b16 %v1038, %v1036
    %v1155 = vpack.c.b16 %v1039, %v1037
    %v1156 = vpack.c.b16 %v1042, %v1040
    %v1157 = vpack.c.b16 %v1043, %v1041
    %v1158 = vpack.c.b16 %v1046, %v1044
    %v1159 = vpack.c.b16 %v1047, %v1045
    %1272 = vmatpush.bf16.msra.mxu0 %v1062
    %1273 = vmatpush.bf16.msra.mxu0 %v1060
    %1274 = vmatpush.bf16.msra.mxu0 %v1058
    %1275 = vmatpush.bf16.msra.mxu0 %v1056
    %1276 = vmatpush.bf16.msra.mxu0 %v1054
    %1277 = vmatpush.bf16.msra.mxu0 %v1052
    %1278 = vmatpush.bf16.msra.mxu0 %v1050
    %1279 = vmatpush.bf16.msra.mxu0 %v1048
    %1280 = vmatmul.bf16.gmra.mxu0 %v698
    %v1281 = vpop.f32.mrf.mxu0
    %v1282 = vadd.f32 %v683, %v1281
    %v1283 = vpop.f32.mrf.mxu0
    %1284 = vdwg.mxu0
    %1285 = vmatpush.bf16.msra.mxu0 %v1078
    %1286 = vmatpush.bf16.msra.mxu0 %v1076
    %1287 = vmatpush.bf16.msra.mxu0 %v1074
    %1288 = vmatpush.bf16.msra.mxu0 %v1072
    %1289 = vmatpush.bf16.msra.mxu0 %v1070
    %1290 = vmatpush.bf16.msra.mxu0 %v1068
    %1291 = vmatpush.bf16.msra.mxu0 %v1066
    %1292 = vmatpush.bf16.msra.mxu0 %v1064
    %1293 = vmatmul.bf16.gmra.mxu0 %v699
    %v1294 = vpop.f32.mrf.mxu0
    %v1295 = vadd.f32 %v1282, %v1294
    %v1296 = vpop.f32.mrf.mxu0
    %1297 = vdwg.mxu0
    %1298 = vmatpush.bf16.msra.mxu0 %v1094
    %1299 = vmatpush.bf16.msra.mxu0 %v1092
    %1300 = vmatpush.bf16.msra.mxu0 %v1090
    %1301 = vmatpush.bf16.msra.mxu0 %v1088
    %1302 = vmatpush.bf16.msra.mxu0 %v1086
    %1303 = vmatpush.bf16.msra.mxu0 %v1084
    %1304 = vmatpush.bf16.msra.mxu0 %v1082
    %1305 = vmatpush.bf16.msra.mxu0 %v1080
    %1306 = vmatmul.bf16.gmra.mxu0 %v700
    %v1307 = vpop.f32.mrf.mxu0
    %v1308 = vadd.f32 %v1295, %v1307
    %v1309 = vpop.f32.mrf.mxu0
    %1310 = vdwg.mxu0
    %1311 = vmatpush.bf16.msra.mxu0 %v1110
    %1312 = vmatpush.bf16.msra.mxu0 %v1108
    %1313 = vmatpush.bf16.msra.mxu0 %v1106
    %1314 = vmatpush.bf16.msra.mxu0 %v1104
    %1315 = vmatpush.bf16.msra.mxu0 %v1102
    %1316 = vmatpush.bf16.msra.mxu0 %v1100
    %1317 = vmatpush.bf16.msra.mxu0 %v1098
    %1318 = vmatpush.bf16.msra.mxu0 %v1096
    %1319 = vmatmul.bf16.gmra.mxu0 %v701
    %v1320 = vpop.f32.mrf.mxu0
    %v1321 = vadd.f32 %v1308, %v1320
    %v1322 = vpop.f32.mrf.mxu0
    %1323 = vdwg.mxu0
    %1324 = vmatpush.bf16.msra.mxu0 %v1126
    %1325 = vmatpush.bf16.msra.mxu0 %v1124
    %1326 = vmatpush.bf16.msra.mxu0 %v1122
    %1327 = vmatpush.bf16.msra.mxu0 %v1120
    %1328 = vmatpush.bf16.msra.mxu0 %v1118
    %1329 = vmatpush.bf16.msra.mxu0 %v1116
    %1330 = vmatpush.bf16.msra.mxu0 %v1114
    %1331 = vmatpush.bf16.msra.mxu0 %v1112
    %1332 = vmatmul.bf16.gmra.mxu0 %v702
    %v1333 = vpop.f32.mrf.mxu0
    %v1334 = vadd.f32 %v1321, %v1333
    %v1335 = vpop.f32.mrf.mxu0
    %1336 = vdwg.mxu0
    %1337 = vmatpush.bf16.msra.mxu0 %v1142
    %1338 = vmatpush.bf16.msra.mxu0 %v1140
    %1339 = vmatpush.bf16.msra.mxu0 %v1138
    %1340 = vmatpush.bf16.msra.mxu0 %v1136
    %1341 = vmatpush.bf16.msra.mxu0 %v1134
    %1342 = vmatpush.bf16.msra.mxu0 %v1132
    %1343 = vmatpush.bf16.msra.mxu0 %v1130
    %1344 = vmatpush.bf16.msra.mxu0 %v1128
    %1345 = vmatmul.bf16.gmra.mxu0 %v703
    %v1346 = vpop.f32.mrf.mxu0
    %v1347 = vadd.f32 %v1334, %v1346
    %v1348 = vpop.f32.mrf.mxu0
    %1349 = vdwg.mxu0
    %1350 = vmatpush.bf16.msra.mxu0 %v1158
    %1351 = vmatpush.bf16.msra.mxu0 %v1156
    %1352 = vmatpush.bf16.msra.mxu0 %v1154
    %1353 = vmatpush.bf16.msra.mxu0 %v1152
    %1354 = vmatpush.bf16.msra.mxu0 %v1150
    %1355 = vmatpush.bf16.msra.mxu0 %v1148
    %1356 = vmatpush.bf16.msra.mxu0 %v1146
    %1357 = vmatpush.bf16.msra.mxu0 %v1144
    %1358 = vmatmul.bf16.gmra.mxu0 %v704
    %v1359 = vpop.f32.mrf.mxu0
    %v1360 = vadd.f32 %v1347, %v1359
    %v1361 = vpop.f32.mrf.mxu0
    %1362 = vdwg.mxu0
    %1363 = vmatpush.bf16.msra.mxu0 %v1063
    %1364 = vmatpush.bf16.msra.mxu0 %v1061
    %1365 = vmatpush.bf16.msra.mxu0 %v1059
    %1366 = vmatpush.bf16.msra.mxu0 %v1057
    %1367 = vmatpush.bf16.msra.mxu0 %v1055
    %1368 = vmatpush.bf16.msra.mxu0 %v1053
    %1369 = vmatpush.bf16.msra.mxu0 %v1051
    %1370 = vmatpush.bf16.msra.mxu0 %v1049
    %1371 = vmatmul.bf16.gmra.mxu0 %v698
    %v1372 = vpop.f32.mrf.mxu0
    %v1373 = vadd.f32 %v684, %v1372
    %v1374 = vpop.f32.mrf.mxu0
    %1375 = vdwg.mxu0
    %1376 = vmatpush.bf16.msra.mxu0 %v1079
    %1377 = vmatpush.bf16.msra.mxu0 %v1077
    %1378 = vmatpush.bf16.msra.mxu0 %v1075
    %1379 = vmatpush.bf16.msra.mxu0 %v1073
    %1380 = vmatpush.bf16.msra.mxu0 %v1071
    %1381 = vmatpush.bf16.msra.mxu0 %v1069
    %1382 = vmatpush.bf16.msra.mxu0 %v1067
    %1383 = vmatpush.bf16.msra.mxu0 %v1065
    %1384 = vmatmul.bf16.gmra.mxu0 %v699
    %v1385 = vpop.f32.mrf.mxu0
    %v1386 = vadd.f32 %v1373, %v1385
    %v1387 = vpop.f32.mrf.mxu0
    %1388 = vdwg.mxu0
    %1389 = vmatpush.bf16.msra.mxu0 %v1095
    %1390 = vmatpush.bf16.msra.mxu0 %v1093
    %1391 = vmatpush.bf16.msra.mxu0 %v1091
    %1392 = vmatpush.bf16.msra.mxu0 %v1089
    %1393 = vmatpush.bf16.msra.mxu0 %v1087
    %1394 = vmatpush.bf16.msra.mxu0 %v1085
    %1395 = vmatpush.bf16.msra.mxu0 %v1083
    %1396 = vmatpush.bf16.msra.mxu0 %v1081
    %1397 = vmatmul.bf16.gmra.mxu0 %v700
    %v1398 = vpop.f32.mrf.mxu0
    %v1399 = vadd.f32 %v1386, %v1398
    %v1400 = vpop.f32.mrf.mxu0
    %1401 = vdwg.mxu0
    %1402 = vmatpush.bf16.msra.mxu0 %v1111
    %1403 = vmatpush.bf16.msra.mxu0 %v1109
    %1404 = vmatpush.bf16.msra.mxu0 %v1107
    %1405 = vmatpush.bf16.msra.mxu0 %v1105
    %1406 = vmatpush.bf16.msra.mxu0 %v1103
    %1407 = vmatpush.bf16.msra.mxu0 %v1101
    %1408 = vmatpush.bf16.msra.mxu0 %v1099
    %1409 = vmatpush.bf16.msra.mxu0 %v1097
    %1410 = vmatmul.bf16.gmra.mxu0 %v701
    %v1411 = vpop.f32.mrf.mxu0
    %v1412 = vadd.f32 %v1399, %v1411
    %v1413 = vpop.f32.mrf.mxu0
    %1414 = vdwg.mxu0
    %1415 = vmatpush.bf16.msra.mxu0 %v1127
    %1416 = vmatpush.bf16.msra.mxu0 %v1125
    %1417 = vmatpush.bf16.msra.mxu0 %v1123
    %1418 = vmatpush.bf16.msra.mxu0 %v1121
    %1419 = vmatpush.bf16.msra.mxu0 %v1119
    %1420 = vmatpush.bf16.msra.mxu0 %v1117
    %1421 = vmatpush.bf16.msra.mxu0 %v1115
    %1422 = vmatpush.bf16.msra.mxu0 %v1113
    %1423 = vmatmul.bf16.gmra.mxu0 %v702
    %v1424 = vpop.f32.mrf.mxu0
    %v1425 = vadd.f32 %v1412, %v1424
    %v1426 = vpop.f32.mrf.mxu0
    %1427 = vdwg.mxu0
    %1428 = vmatpush.bf16.msra.mxu0 %v1143
    %1429 = vmatpush.bf16.msra.mxu0 %v1141
    %1430 = vmatpush.bf16.msra.mxu0 %v1139
    %1431 = vmatpush.bf16.msra.mxu0 %v1137
    %1432 = vmatpush.bf16.msra.mxu0 %v1135
    %1433 = vmatpush.bf16.msra.mxu0 %v1133
    %1434 = vmatpush.bf16.msra.mxu0 %v1131
    %1435 = vmatpush.bf16.msra.mxu0 %v1129
    %1436 = vmatmul.bf16.gmra.mxu0 %v703
    %v1437 = vpop.f32.mrf.mxu0
    %v1438 = vadd.f32 %v1425, %v1437
    %v1439 = vpop.f32.mrf.mxu0
    %1440 = vdwg.mxu0
    %1441 = vmatpush.bf16.msra.mxu0 %v1159
    %1442 = vmatpush.bf16.msra.mxu0 %v1157
    %1443 = vmatpush.bf16.msra.mxu0 %v1155
    %1444 = vmatpush.bf16.msra.mxu0 %v1153
    %1445 = vmatpush.bf16.msra.mxu0 %v1151
    %1446 = vmatpush.bf16.msra.mxu0 %v1149
    %1447 = vmatpush.bf16.msra.mxu0 %v1147
    %1448 = vmatpush.bf16.msra.mxu0 %v1145
    %1449 = vmatmul.bf16.gmra.mxu0 %v704
    %v1450 = vpop.f32.mrf.mxu0
    %v1451 = vadd.f32 %v1438, %v1450
    %v1452 = vpop.f32.mrf.mxu0
    %1453 = vdwg.mxu0
    %1454 = vst [vmem:[#allocation12] sm:$0xff] %v1360
    %1455 = vst [vmem:[#allocation12 + $0x8] sm:$0xff] %v1451
    %v1459 = vrot.slane %v565, 4
    %v1460 = vrot.slane %v566, 4
    %v1461 = vrot.slane %v567, 4
    %v1462 = vrot.slane %v568, 4
    %vm1463 = vcmask 1043456
    %v1464 = vsel %vm1463, %v1459, %v1460
    %v1465 = vsel %vm1463, %v1460, %v1461
    %v1466 = vsel %vm1463, %v1461, %v1462
    %v1471 = vunpack.c.l.bf16 %v1464
    %v1472 = vunpack.c.h.bf16 %v1464
    %v1473 = vunpack.c.l.bf16 %v1465
    %v1474 = vunpack.c.h.bf16 %v1465
    %v1475 = vunpack.c.l.bf16 %v1466
    %v1476 = vunpack.c.h.bf16 %v1466
    %v1477 = vunpack.c.l.bf16 %v1462
    %v1478 = vld [vmem:[#allocation11] sm:$0xff]
    %v1480 = vperm.slane %v1478, 0
    %v1481 = vperm.slane %v1478, 1
    %v1482 = vperm.slane %v1478, 2
    %v1483 = vperm.slane %v1478, 3
    %v1484 = vperm.slane %v1478, 4
    %v1485 = vperm.slane %v1478, 5
    %v1486 = vperm.slane %v1478, 6
    %v1494 = vmul.f32 %v1471, %v1480
    %v1495 = vmul.f32 %v1472, %v1481
    %v1496 = vmul.f32 %v1473, %v1482
    %v1497 = vmul.f32 %v1474, %v1483
    %v1498 = vmul.f32 %v1475, %v1484
    %v1499 = vmul.f32 %v1476, %v1485
    %v1500 = vmul.f32 %v1477, %v1486
    %v1501 = vadd.f32 %v1494, %v1495
    %v1502 = vadd.f32 %v1501, %v1496
    %v1503 = vadd.f32 %v1502, %v1497
    %v1504 = vadd.f32 %v1503, %v1498
    %v1505 = vadd.f32 %v1504, %v1499
    %v1506 = vadd.f32 %v1505, %v1500
    %1507 = vadd.xlane.f32.xlu0 %v1506
    %v1508 = vpop.xlane.xlu0 %1507
    %v1509 = vld [vmem:[#allocation2] sm:$0x1]
    %v1511 = vperm.slane %v1509, 0
    %v1513 = vadd.f32 %v1508, %v1511
    %vm1514 = vcmask 7168
    %1515 = vst.msk [vmem:[%s8] sm:$0xff] %vm1514, %v1513
    // Predicated region
    $region50: #{net_forward.1} parent=1 // pred_check
      _
    $region51: #{net_forward.1} parent=1 // pred_check_branch
      %1517 = sbr.rel (0) target = $region53
    $region52: #{net_forward.1} parent=1 // pred_region
      %1519 = vsyncadd [#allocation5], 0
      %s1521 = sshll.u32 [#allocation12], 4
      %s1522 = int_to_ptr.vmem [resolvable:$true] %s1521
      %s1523 = sshll.u32 %s7, 4
      %s1524 = int_to_ptr.hbm [resolvable:$true] %s1523
      %1526 = dma.vmem_to_hbm [thread:$0]  %s1522, 256, %s1524, [#allocation5]
    $region53: #{net_forward.1} parent=1 // pred_fallthru
      _
    // Predicated region
    $region54: #{net_forward.1} parent=1 // pred_check
      _
    $region55: #{net_forward.1} parent=1 // pred_check_branch
      %1528 = sbr.rel (0) target = $region57
    $region56: #{net_forward.1} parent=1 // pred_region
      _
    $region57: #{net_forward.1} parent=1 // pred_fallthru
      _
    // Predicated region
    $region58: #{net_forward.1} parent=1 // pred_check
      _
    $region59: #{net_forward.1} parent=1 // pred_check_branch
      %1530 = sbr.rel (0) target = $region61
    $region60: #{net_forward.1} parent=1 // pred_region
      %1532 = dma.done [#allocation5], 256
    $region61: #{net_forward.1} parent=1 // pred_fallthru
      _
    // Predicated region
    $region62: #{net_forward.1} parent=1 // pred_check
      _
    $region63: #{net_forward.1} parent=1 // pred_check_branch
      %1534 = sbr.rel (0) target = $region65
    $region64: #{net_forward.1} parent=1 // pred_region
      _
    $region65: #{net_forward.1} parent=1 // pred_fallthru
      _
    %1535 = vsyncpa [#allocation4], 1
    %1536 = vsyncpa [#allocation7], 1
    %1537 = vsyncpa [#allocation10], 1
    %1538 = vsyncpa [#allocation5], 1

</llo_original>
